<compile_context>
chip_gen: v7x
topology: tpu7x:2x2x1
jax: 0.10.0
libtpu: 0.0.40
codegen_flags: <defaults>
</compile_context>

<pallas_src>
import jax
import jax.numpy as jnp
import numpy as np
from jax.experimental import pallas as pl
from jax.experimental.pallas import tpu as pltpu


# ----------------------------------------------------------------------------
# Fused DPM kernel: one batch chunk (usually the whole batch) per grid step.
# ----------------------------------------------------------------------------
def _make_dpm_kernel(HW_valid, HW_pad):
    needs_mask = HW_pad > HW_valid

    def kernel(x_ref, wm_ref, w1t_ref, w2t_ref, out_ref):
        x = x_ref[...].astype(jnp.float32)                    # (Bt, C, HWp)

        # conv_mask: 1x1 conv C->1 (no bias) on the VPU:
        # logits[b,hw] = sum_c wm[c] * x[b,c,hw]   (C sits on sublanes)
        wm = wm_ref[...].astype(jnp.float32)                  # (C, 1)
        logits = jnp.sum(x * wm[None, :, :], axis=1)          # (Bt, HWp)

        if needs_mask:  # padded spatial lanes must not contribute to softmax
            lane = jax.lax.broadcasted_iota(jnp.int32, logits.shape, 1)
            logits = jnp.where(lane < HW_valid, logits, -jnp.inf)

        # spatial softmax (normalization folded into the context scale)
        m = jnp.max(logits, axis=-1, keepdims=True)           # (Bt, 1)
        e = jnp.exp(logits - m)                                # (Bt, HWp)
        inv = 1.0 / jnp.sum(e, axis=-1, keepdims=True)        # (Bt, 1)

        # context pooling: ctx[b,c] = inv[b] * sum_hw x[b,c,hw] * e[b,hw]
        ctx = jnp.sum(x * e[:, None, :], axis=-1) * inv       # (Bt, C)

        # channel_add_conv: 1x1 (C->P, no bias) -> LeakyReLU(0.2) -> 1x1 (P->C)
        # batched over the whole chunk: two matmuls instead of 2*B tiny ones.
        y1 = jnp.dot(ctx, w1t_ref[...].astype(jnp.float32),
                     preferred_element_type=jnp.float32)       # (Bt, P)
        y1 = jnp.where(y1 >= 0, y1, 0.2 * y1)
        y2 = jnp.dot(y1, w2t_ref[...].astype(jnp.float32),
                     preferred_element_type=jnp.float32)       # (Bt, C)

        # residual broadcast-add over the whole feature map
        out_ref[...] = (x + y2[:, :, None]).astype(out_ref.dtype)

    return kernel


def _dpm_forward_impl(x_nchw, wm, w1, w2):
    """DPM forward pass.

    x_nchw : (B, C, H, W)  input feature map (NCHW, as in PyTorch)
    wm     : (1, C)        conv_mask weight        (torch (1, C, 1, 1) squeezed)
    w1     : (P, C)        channel_add_conv[0] wt  (torch (P, C, 1, 1) squeezed)
    w2     : (C, P)        channel_add_conv[2] wt  (torch (C, P, 1, 1) squeezed)
    """
    B, C, H, W = x_nchw.shape
    P = w1.shape[0]
    HW = H * W
    HW_pad = ((HW + 127) // 128) * 128        # lane-dense guard

    x = x_nchw.reshape(B, C, HW)              # free reshape; HW lands on lanes
    if HW_pad != HW:
        x = jnp.pad(x, ((0, 0), (0, 0), (0, HW_pad - HW)))

    # One big batch block per grid step (capped so huge batches still fit VMEM).
    bt = min(B, 128)
    while B % bt != 0:
        bt -= 1
    grid = (B // bt,)

    wm_c1 = wm.reshape(C, 1)                  # C on sublanes (no in-kernel relayout)
    w1t = w1.T                                # (C, P)
    w2t = w2.T                                # (P, C)

    out = pl.pallas_call(
        _make_dpm_kernel(HW, HW_pad),
        out_shape=jax.ShapeDtypeStruct((B, C, HW_pad), x.dtype),
        grid=grid,
        in_specs=[
            pl.BlockSpec((bt, C, HW_pad), lambda b: (b, 0, 0)),
            pl.BlockSpec((C, 1), lambda b: (0, 0)),
            pl.BlockSpec((C, P), lambda b: (0, 0)),
            pl.BlockSpec((P, C), lambda b: (0, 0)),
        ],
        out_specs=pl.BlockSpec((bt, C, HW_pad), lambda b: (b, 0, 0)),
        input_output_aliases={0: 0},          # out = x + broadcast(y2)
        compiler_params=pltpu.CompilerParams(
            dimension_semantics=("parallel",)),
    )(x, wm_c1, w1t, w2t)

    if HW_pad != HW:
        out = out[:, :, :HW]
    return out.reshape(B, C, H, W)


dpm_forward = jax.jit(_dpm_forward_impl)


# ----------------------------------------------------------------------------
# Pure-JAX reference mirroring PyTorch DPM.forward exactly
# ----------------------------------------------------------------------------
def dpm_reference(x, wm, w1, w2):
    B, C, H, W = x.shape
    xf = x.reshape(B, C, H * W)
    logits = jnp.einsum("c,bch->bh", wm.reshape(-1), xf)        # conv_mask
    pmask = jax.nn.softmax(logits, axis=-1)                     # Softmax(dim=2)
    ctx = jnp.einsum("bch,bh->bc", xf, pmask)                   # spatial_pool
    y1 = jnp.einsum("pc,bc->bp", w1, ctx)
    y1 = jnp.where(y1 >= 0, y1, 0.2 * y1)                       # LeakyReLU(0.2)
    y2 = jnp.einsum("cp,bp->bc", w2, y1)
    return x + y2[:, :, None, None]


if __name__ == "__main__":
    # DPM(inplanes=32, planes=32) as instantiated in AENet; bias=False default.
    key = jax.random.PRNGKey(0)
    kx, k1, k2, k3 = jax.random.split(key, 4)
    B, C, P, H, W = 2, 32, 32, 16, 16
    x = jax.random.normal(kx, (B, C, H, W), jnp.float32)
    wm = jax.random.normal(k1, (1, C), jnp.float32) * 0.1       # conv_mask
    w1 = jax.random.normal(k2, (P, C), jnp.float32) * 0.1       # channel_add[0]
    w2 = jax.random.normal(k3, (C, P), jnp.float32) * 0.1       # channel_add[2]

    out = jax.block_until_ready(dpm_forward(x, wm, w1, w2))
    ref = jax.block_until_ready(dpm_reference(x, wm, w1, w2))

    assert out.shape == (B, C, H, W), out.shape
    np.testing.assert_allclose(np.asarray(out), np.asarray(ref),
                               rtol=2e-5, atol=2e-5)
    print("KERNEL_OK")
</pallas_src>

<mosaic_0001>
module attributes {stable_mosaic.version = 11 : i64} {
  func.func @kernel(%arg0: i32, %arg1: memref<2x32x256xf32, #tpu.memory_space<vmem>>, %arg2: memref<32x1xf32, #tpu.memory_space<vmem>>, %arg3: memref<32x32xf32, #tpu.memory_space<vmem>>, %arg4: memref<32x32xf32, #tpu.memory_space<vmem>>, %arg5: memref<2x32x256xf32, #tpu.memory_space<vmem>>) attributes {dimension_semantics = [#tpu.dimension_semantics<parallel>], iteration_bounds = array<i64: 1>, scalar_prefetch = 0 : i64, scratch_operands = 0 : i64, tpu.core_type = #tpu.core_type<tc>, window_params = [{transform_indices = @transform_0, window_bounds = array<i64: 2, 32, 256>}, {pipeline_mode = #tpu.pipeline_mode<synchronous>, transform_indices = @transform_1, window_bounds = array<i64: 32, 1>}, {pipeline_mode = #tpu.pipeline_mode<synchronous>, transform_indices = @transform_2, window_bounds = array<i64: 32, 32>}, {pipeline_mode = #tpu.pipeline_mode<synchronous>, transform_indices = @transform_3, window_bounds = array<i64: 32, 32>}, {transform_indices = @transform_4, window_bounds = array<i64: 2, 32, 256>}]} {
    %c0 = arith.constant 0 : index
    %c0_0 = arith.constant 0 : index
    %c0_1 = arith.constant 0 : index
    %0 = vector.load %arg1[%c0, %c0_0, %c0_1] : memref<2x32x256xf32, #tpu.memory_space<vmem>>, vector<2x32x256xf32>
    %c0_2 = arith.constant 0 : index
    %c0_3 = arith.constant 0 : index
    %1 = vector.load %arg2[%c0_2, %c0_3] : memref<32x1xf32, #tpu.memory_space<vmem>>, vector<32x1xf32>
    %2 = vector.shape_cast %1 : vector<32x1xf32> to vector<1x32x1xf32>
    %3 = vector.broadcast %2 : vector<1x32x1xf32> to vector<2x32x256xf32>
    %4 = arith.mulf %0, %3 : vector<2x32x256xf32>
    %cst = arith.constant dense<0.000000e+00> : vector<2x256xf32>
    %5 = vector.multi_reduction <add>, %4, %cst [1] : vector<2x32x256xf32> to vector<2x256xf32>
    %cst_4 = arith.constant dense<0xFF800000> : vector<2xf32>
    %6 = vector.multi_reduction <maximumf>, %5, %cst_4 [1] : vector<2x256xf32> to vector<2xf32>
    %7 = vector.shape_cast %6 : vector<2xf32> to vector<2x1xf32>
    %8 = vector.broadcast %7 : vector<2x1xf32> to vector<2x256xf32>
    %9 = arith.subf %5, %8 : vector<2x256xf32>
    %10 = math.exp %9 : vector<2x256xf32>
    %cst_5 = arith.constant dense<0.000000e+00> : vector<2xf32>
    %11 = vector.multi_reduction <add>, %10, %cst_5 [1] : vector<2x256xf32> to vector<2xf32>
    %12 = vector.shape_cast %11 : vector<2xf32> to vector<2x1xf32>
    %cst_6 = arith.constant 1.000000e+00 : f32
    %13 = vector.broadcast %cst_6 : f32 to vector<2x1xf32>
    %14 = arith.divf %13, %12 : vector<2x1xf32>
    %15 = vector.shape_cast %10 : vector<2x256xf32> to vector<2x1x256xf32>
    %16 = vector.broadcast %15 : vector<2x1x256xf32> to vector<2x32x256xf32>
    %17 = arith.mulf %0, %16 : vector<2x32x256xf32>
    %cst_7 = arith.constant dense<0.000000e+00> : vector<2x32xf32>
    %18 = vector.multi_reduction <add>, %17, %cst_7 [2] : vector<2x32x256xf32> to vector<2x32xf32>
    %19 = vector.broadcast %14 : vector<2x1xf32> to vector<2x32xf32>
    %20 = arith.mulf %18, %19 : vector<2x32xf32>
    %c0_8 = arith.constant 0 : index
    %c0_9 = arith.constant 0 : index
    %21 = vector.load %arg3[%c0_8, %c0_9] : memref<32x32xf32, #tpu.memory_space<vmem>>, vector<32x32xf32>
    %cst_10 = arith.constant dense<0.000000e+00> : vector<2x32xf32>
    %22 = tpu.matmul %20, %21, %cst_10 {dimension_numbers = #tpu.dot_dimension_numbers<[1], [0], [0], [1], [0, 0, 1, 1], [], []>} : vector<2x32xf32>, vector<32x32xf32>, vector<2x32xf32> -> vector<2x32xf32>
    %cst_11 = arith.constant 0.000000e+00 : f32
    %23 = vector.broadcast %cst_11 : f32 to vector<2x32xf32>
    %24 = arith.cmpf oge, %22, %23 : vector<2x32xf32>
    %cst_12 = arith.constant 2.000000e-01 : f32
    %25 = vector.broadcast %cst_12 : f32 to vector<2x32xf32>
    %26 = arith.mulf %25, %22 : vector<2x32xf32>
    %27 = arith.select %24, %22, %26 : vector<2x32xi1>, vector<2x32xf32>
    %c0_13 = arith.constant 0 : index
    %c0_14 = arith.constant 0 : index
    %28 = vector.load %arg4[%c0_13, %c0_14] : memref<32x32xf32, #tpu.memory_space<vmem>>, vector<32x32xf32>
    %cst_15 = arith.constant dense<0.000000e+00> : vector<2x32xf32>
    %29 = tpu.matmul %27, %28, %cst_15 {dimension_numbers = #tpu.dot_dimension_numbers<[1], [0], [0], [1], [0, 0, 1, 1], [], []>} : vector<2x32xf32>, vector<32x32xf32>, vector<2x32xf32> -> vector<2x32xf32>
    %30 = vector.shape_cast %29 : vector<2x32xf32> to vector<2x32x1xf32>
    %31 = vector.broadcast %30 : vector<2x32x1xf32> to vector<2x32x256xf32>
    %32 = arith.addf %0, %31 : vector<2x32x256xf32>
    %c0_16 = arith.constant 0 : index
    %c0_17 = arith.constant 0 : index
    %c0_18 = arith.constant 0 : index
    %33 = vector.load %arg5[%c0_16, %c0_17, %c0_18] : memref<2x32x256xf32, #tpu.memory_space<vmem>>, vector<2x32x256xf32>
    tpu.vector_store %arg5[%c0_16, %c0_17, %c0_18], %32 {strides = array<i32>} : memref<2x32x256xf32, #tpu.memory_space<vmem>>, vector<2x32x256xf32>,
    return
  }
  func.func @transform_0(%arg0: i32) -> (i32, i32, i32) {
    %c0_i32 = arith.constant 0 : i32
    %c0_i32_0 = arith.constant 0 : i32
    %c0_i32_1 = arith.constant 0 : i32
    return %arg0, %c0_i32, %c0_i32_0 : i32, i32, i32
  }
  func.func @transform_1(%arg0: i32) -> (i32, i32) {
    %c0_i32 = arith.constant 0 : i32
    %c0_i32_0 = arith.constant 0 : i32
    %c0_i32_1 = arith.constant 0 : i32
    return %c0_i32, %c0_i32_0 : i32, i32
  }
  func.func @transform_2(%arg0: i32) -> (i32, i32) {
    %c0_i32 = arith.constant 0 : i32
    %c0_i32_0 = arith.constant 0 : i32
    %c0_i32_1 = arith.constant 0 : i32
    return %c0_i32, %c0_i32_0 : i32, i32
  }
  func.func @transform_3(%arg0: i32) -> (i32, i32) {
    %c0_i32 = arith.constant 0 : i32
    %c0_i32_0 = arith.constant 0 : i32
    %c0_i32_1 = arith.constant 0 : i32
    return %c0_i32, %c0_i32_0 : i32, i32
  }
  func.func @transform_4(%arg0: i32) -> (i32, i32, i32) {
    %c0_i32 = arith.constant 0 : i32
    %c0_i32_0 = arith.constant 0 : i32
    %c0_i32_1 = arith.constant 0 : i32
    return %arg0, %c0_i32, %c0_i32_0 : i32, i32, i32
  }
}

</mosaic_0001>

<llo_original>
// kernel: _dpm_forward_impl.1
$region0: #{_dpm_forward_impl.1}
  #allocation0 [shape = 'u32[]', space=smem, size = 0x4, offset = 0x4, fixed_abs, tag = 'smem constant byte address 0x4 - core index']
  #allocation1 [shape = 'u32[144,128]{1,0:T(1,128)}', space=vmem, size = 0x12000, scoped, tag = 'internal scratch']
  %s0 = inlined_call_operand.vmem [shape: f32[2,32,256], index: 0, kind: input, shape index: {}, may-alias: {0,4}]
  %s1 = inlined_call_operand.vmem [shape: f32[32,1], index: 1, kind: input, shape index: {}]
  %s2 = inlined_call_operand.vmem [shape: f32[32,32], index: 2, kind: input, shape index: {}]
  %s3 = inlined_call_operand.vmem [shape: f32[32,32], index: 3, kind: input, shape index: {}]
  %s4 = inlined_call_operand.vmem [shape: f32[2,32,256], index: 4, kind: output, shape index: {}, may-alias: {0,4}]
  %s5 = sld [smem:[#allocation0]]
  $region26: #{_dpm_forward_impl.1} parent=0
    _
  %s7 = ssub.s32 1, %s5
  %s8 = scalar_select 0, %s7, %s5
  // Predicated region
  $region2: #{_dpm_forward_impl.1} parent=0 // pred_check
    _
  $region3: #{_dpm_forward_impl.1} parent=0 // pred_check_branch
    %10 = sbr.rel (0) target = $region5
  $region4: #{_dpm_forward_impl.1} parent=0 // pred_region
    _
  $region5: #{_dpm_forward_impl.1} parent=0 // pred_fallthru
    _
  // Predicated region
  $region6: #{_dpm_forward_impl.1} parent=0 // pred_check
    _
  $region7: #{_dpm_forward_impl.1} parent=0 // pred_check_branch
    %12 = sbr.rel (0) target = $region9
  $region8: #{_dpm_forward_impl.1} parent=0 // pred_region
    _
  $region9: #{_dpm_forward_impl.1} parent=0 // pred_fallthru
    _
  // Predicated region
  $region10: #{_dpm_forward_impl.1} parent=0 // pred_check
    _
  $region11: #{_dpm_forward_impl.1} parent=0 // pred_check_branch
    %14 = sbr.rel (0) target = $region13
  $region12: #{_dpm_forward_impl.1} parent=0 // pred_region
    _
  $region13: #{_dpm_forward_impl.1} parent=0 // pred_fallthru
    _
  // Predicated region
  $region14: #{_dpm_forward_impl.1} parent=0 // pred_check
    _
  $region15: #{_dpm_forward_impl.1} parent=0 // pred_check_branch
    %16 = sbr.rel (0) target = $region17
  $region16: #{_dpm_forward_impl.1} parent=0 // pred_region
    _
  $region17: #{_dpm_forward_impl.1} parent=0 // pred_fallthru
    _
  %v17 = vld [vmem:[%s0] sm:$0xff]
  %v18 = vld [vmem:[%s0 + $0x8] sm:$0xff]
  %v19 = vld [vmem:[%s0 + $0x10] sm:$0xff]
  %v20 = vld [vmem:[%s0 + $0x18] sm:$0xff]
  %v21 = vld [vmem:[%s0 + $0x20] sm:$0xff]
  %v22 = vld [vmem:[%s0 + $0x28] sm:$0xff]
  %v23 = vld [vmem:[%s0 + $0x30] sm:$0xff]
  %v24 = vld [vmem:[%s0 + $0x38] sm:$0xff]
  %v25 = vld [vmem:[%s0 + $0x40] sm:$0xff]
  %v26 = vld [vmem:[%s0 + $0x48] sm:$0xff]
  %v27 = vld [vmem:[%s0 + $0x50] sm:$0xff]
  %v28 = vld [vmem:[%s0 + $0x58] sm:$0xff]
  %v29 = vld [vmem:[%s0 + $0x60] sm:$0xff]
  %v30 = vld [vmem:[%s0 + $0x68] sm:$0xff]
  %v31 = vld [vmem:[%s0 + $0x70] sm:$0xff]
  %v32 = vld [vmem:[%s0 + $0x78] sm:$0xff]
  %v33 = vld [vmem:[%s1] sm:$0xff]
  %v34 = vld [vmem:[%s1 + $0x8] sm:$0xff]
  %v35 = vld [vmem:[%s1 + $0x10] sm:$0xff]
  %v36 = vld [vmem:[%s1 + $0x18] sm:$0xff]
  %38 = vset.pattern.permute.xlu0 0
  %39 = vperm.xlu0 %38, %v33
  %v40 = vpop.permute.xlu0 %39
  %43 = vset.pattern.permute.xlu0 0
  %44 = vperm.xlu0 %43, %v34
  %v45 = vpop.permute.xlu0 %44
  %48 = vset.pattern.permute.xlu0 0
  %49 = vperm.xlu0 %48, %v35
  %v50 = vpop.permute.xlu0 %49
  %53 = vset.pattern.permute.xlu0 0
  %54 = vperm.xlu0 %53, %v36
  %v55 = vpop.permute.xlu0 %54
  %v57 = vmul.f32 %v17, %v40
  %v58 = vmul.f32 %v18, %v40
  %v59 = vmul.f32 %v19, %v45
  %v60 = vmul.f32 %v20, %v45
  %v61 = vmul.f32 %v21, %v50
  %v62 = vmul.f32 %v22, %v50
  %v63 = vmul.f32 %v23, %v55
  %v64 = vmul.f32 %v24, %v55
  %v65 = vmul.f32 %v25, %v40
  %v66 = vmul.f32 %v26, %v40
  %v67 = vmul.f32 %v27, %v45
  %v68 = vmul.f32 %v28, %v45
  %v69 = vmul.f32 %v29, %v50
  %v70 = vmul.f32 %v30, %v50
  %v71 = vmul.f32 %v31, %v55
  %v72 = vmul.f32 %v32, %v55
  %v73 = vadd.f32 %v57, %v59
  %v74 = vadd.f32 %v73, %v61
  %v75 = vadd.f32 %v74, %v63
  %v76 = vrot.slane %v75, 4
  %v77 = vadd.f32 %v75, %v76
  %v78 = vrot.slane %v77, 2
  %v79 = vadd.f32 %v77, %v78
  %v80 = vrot.slane %v79, 1
  %v81 = vadd.f32 %v79, %v80
  %v82 = vadd.f32 %v58, %v60
  %v83 = vadd.f32 %v82, %v62
  %v84 = vadd.f32 %v83, %v64
  %v85 = vrot.slane %v84, 4
  %v86 = vadd.f32 %v84, %v85
  %v87 = vrot.slane %v86, 2
  %v88 = vadd.f32 %v86, %v87
  %v89 = vrot.slane %v88, 1
  %v90 = vadd.f32 %v88, %v89
  %v91 = vadd.f32 %v65, %v67
  %v92 = vadd.f32 %v91, %v69
  %v93 = vadd.f32 %v92, %v71
  %v94 = vrot.slane %v93, 4
  %v95 = vadd.f32 %v93, %v94
  %v96 = vrot.slane %v95, 2
  %v97 = vadd.f32 %v95, %v96
  %v98 = vrot.slane %v97, 1
  %v99 = vadd.f32 %v97, %v98
  %v100 = vadd.f32 %v66, %v68
  %v101 = vadd.f32 %v100, %v70
  %v102 = vadd.f32 %v101, %v72
  %v103 = vrot.slane %v102, 4
  %v104 = vadd.f32 %v102, %v103
  %v105 = vrot.slane %v104, 2
  %v106 = vadd.f32 %v104, %v105
  %v107 = vrot.slane %v106, 1
  %v108 = vadd.f32 %v106, %v107
  %vm113 = vcmask 1041409
  %v114 = vsel %vm113, %v99, %v81
  %v115 = vsel %vm113, %v108, %v90
  %vm118 = vcmask 1041408
  %v119 = vsel %vm118, %v114, -inf
  %v120 = vsel %vm118, %v115, -inf
  %v121 = vmax.f32 %v119, %v120
  %122 = vmax.xlane.f32.xlu0 %v121
  %v123 = vpop.xlane.xlu0 %122
  %v125 = vrot.slane %v123, 1
  %v128 = vsub.f32 %v81, %v123
  %v129 = vsub.f32 %v90, %v123
  %v130 = vsub.f32 %v99, %v125
  %v131 = vsub.f32 %v108, %v125
  %v132 = vmul.f32 %v128, 1.442695
  %v133 = vpow.pop %v132
  %v134 = vmul.f32 %v129, 1.442695
  %v135 = vpow.pop %v134
  %v136 = vmul.f32 %v130, 1.442695
  %v137 = vpow.pop %v136
  %v138 = vmul.f32 %v131, 1.442695
  %v139 = vpow.pop %v138
  %v144 = vrot.slane %v137, 7
  %v145 = vsel %vm113, %v144, %v133
  %v146 = vrot.slane %v139, 7
  %v147 = vsel %vm113, %v146, %v135
  %v150 = vsel %vm118, %v145, 0.0
  %v151 = vsel %vm118, %v147, 0.0
  %v152 = vadd.f32 %v150, %v151
  %153 = vadd.xlane.f32.xlu0 %v152
  %v154 = vpop.xlane.xlu0 %153
  %v155 = vrcp.pop %v154
  %v156 = vmul.f32 1.0, %v155
  %v157 = vlaneseq
  %v158 = vshrl.u32 %v157, 7
  %v159 = vsub.s32 0, %v158
  %v160 = vrot.slane %v133, %v159
  %v161 = vlaneseq
  %v162 = vshrl.u32 %v161, 7
  %v163 = vsub.s32 0, %v162
  %v164 = vrot.slane %v135, %v163
  %v165 = vlaneseq
  %v166 = vshrl.u32 %v165, 7
  %v167 = vsub.s32 0, %v166
  %v168 = vrot.slane %v137, %v167
  %v169 = vlaneseq
  %v170 = vshrl.u32 %v169, 7
  %v171 = vsub.s32 0, %v170
  %v172 = vrot.slane %v139, %v171
  %v173 = vmul.f32 %v17, %v160
  %v174 = vmul.f32 %v18, %v164
  %v175 = vmul.f32 %v19, %v160
  %v176 = vmul.f32 %v20, %v164
  %v177 = vmul.f32 %v21, %v160
  %v178 = vmul.f32 %v22, %v164
  %v179 = vmul.f32 %v23, %v160
  %v180 = vmul.f32 %v24, %v164
  %v181 = vmul.f32 %v25, %v168
  %v182 = vmul.f32 %v26, %v172
  %v183 = vmul.f32 %v27, %v168
  %v184 = vmul.f32 %v28, %v172
  %v185 = vmul.f32 %v29, %v168
  %v186 = vmul.f32 %v30, %v172
  %v187 = vmul.f32 %v31, %v168
  %v188 = vmul.f32 %v32, %v172
  %v189 = vadd.f32 %v173, %v174
  %190 = vadd.xlane.f32.xlu0 %v189
  %v191 = vpop.xlane.xlu0 %190
  %v192 = vadd.f32 %v175, %v176
  %193 = vadd.xlane.f32.xlu0 %v192
  %v194 = vpop.xlane.xlu0 %193
  %v195 = vadd.f32 %v177, %v178
  %196 = vadd.xlane.f32.xlu0 %v195
  %v197 = vpop.xlane.xlu0 %196
  %v198 = vadd.f32 %v179, %v180
  %199 = vadd.xlane.f32.xlu0 %v198
  %v200 = vpop.xlane.xlu0 %199
  %v201 = vadd.f32 %v181, %v182
  %202 = vadd.xlane.f32.xlu0 %v201
  %v203 = vpop.xlane.xlu0 %202
  %v204 = vadd.f32 %v183, %v184
  %205 = vadd.xlane.f32.xlu0 %v204
  %v206 = vpop.xlane.xlu0 %205
  %v207 = vadd.f32 %v185, %v186
  %208 = vadd.xlane.f32.xlu0 %v207
  %v209 = vpop.xlane.xlu0 %208
  %v210 = vadd.f32 %v187, %v188
  %211 = vadd.xlane.f32.xlu0 %v210
  %v212 = vpop.xlane.xlu0 %211
  %v214 = vlaneseq
  %v215 = vshrl.u32 %v214, 7
  %v216 = vsub.s32 0, %v215
  %v217 = vrot.slane %v156, %v216
  %v218 = vlaneseq
  %v219 = vshrl.u32 %v218, 7
  %v220 = vsub.s32 1, %v219
  %v221 = vrot.slane %v156, %v220
  %v224 = vmul.f32 %v191, %v217
  %v225 = vmul.f32 %v194, %v217
  %v226 = vmul.f32 %v197, %v217
  %v227 = vmul.f32 %v200, %v217
  %v228 = vmul.f32 %v203, %v221
  %v229 = vmul.f32 %v206, %v221
  %v230 = vmul.f32 %v209, %v221
  %v231 = vmul.f32 %v212, %v221
  %v232 = vld [vmem:[%s2] sm:$0xff]
  %v233 = vld [vmem:[%s2 + $0x8] sm:$0xff]
  %v234 = vld [vmem:[%s2 + $0x10] sm:$0xff]
  %v235 = vld [vmem:[%s2 + $0x18] sm:$0xff]
  %244 = vset.pattern.permute.xlu0 0
  %245 = vperm.xlu0 %244, %v224
  %v246 = vpop.permute.xlu0 %245
  %247 = vset.pattern.permute.xlu0 0
  %248 = vperm.xlu0 %247, %v225
  %v249 = vpop.permute.xlu0 %248
  %250 = vset.pattern.permute.xlu0 0
  %251 = vperm.xlu0 %250, %v226
  %v252 = vpop.permute.xlu0 %251
  %253 = vset.pattern.permute.xlu0 0
  %254 = vperm.xlu0 %253, %v227
  %v255 = vpop.permute.xlu0 %254
  %256 = vset.pattern.permute.xlu0 0
  %257 = vperm.xlu0 %256, %v228
  %v258 = vpop.permute.xlu0 %257
  %259 = vset.pattern.permute.xlu0 0
  %260 = vperm.xlu0 %259, %v229
  %v261 = vpop.permute.xlu0 %260
  %262 = vset.pattern.permute.xlu0 0
  %263 = vperm.xlu0 %262, %v230
  %v264 = vpop.permute.xlu0 %263
  %265 = vset.pattern.permute.xlu0 0
  %266 = vperm.xlu0 %265, %v231
  %v267 = vpop.permute.xlu0 %266
  %v268 = vlaneseq
  %v269 = vand.u32 %v268, 127
  %v270 = vlaneseq
  %v271 = vshrl.u32 %v270, 7
  %v272 = vsub.s32 %v269, %v271
  %v273 = vrot.slane %v246, %v272
  %v274 = vadd.s32 %v269, 4294967288
  %v275 = vlaneseq
  %v276 = vshrl.u32 %v275, 7
  %v277 = vsub.s32 %v274, %v276
  %v278 = vrot.slane %v249, %v277
  %vm279 = vcmask 130112
  %v280 = vsel %vm279, %v278, %v273
  %v281 = vadd.s32 %v269, 4294967280
  %v282 = vlaneseq
  %v283 = vshrl.u32 %v282, 7
  %v284 = vsub.s32 %v281, %v283
  %v285 = vrot.slane %v252, %v284
  %vm286 = vcmask 195712
  %v287 = vsel %vm286, %v285, %v280
  %v288 = vadd.s32 %v269, 4294967272
  %v289 = vlaneseq
  %v290 = vshrl.u32 %v289, 7
  %v291 = vsub.s32 %v288, %v290
  %v292 = vrot.slane %v255, %v291
  %vm293 = vcmask 261312
  %v294 = vsel %vm293, %v292, %v287
  %v295 = vlaneseq
  %v296 = vshrl.u32 %v295, 7
  %v297 = vsub.s32 %v269, %v296
  %v298 = vrot.slane %v258, %v297
  %v299 = vlaneseq
  %v300 = vshrl.u32 %v299, 7
  %v301 = vsub.s32 %v274, %v300
  %v302 = vrot.slane %v261, %v301
  %v303 = vsel %vm279, %v302, %v298
  %v304 = vlaneseq
  %v305 = vshrl.u32 %v304, 7
  %v306 = vsub.s32 %v281, %v305
  %v307 = vrot.slane %v264, %v306
  %v308 = vsel %vm286, %v307, %v303
  %v309 = vlaneseq
  %v310 = vshrl.u32 %v309, 7
  %v311 = vsub.s32 %v288, %v310
  %v312 = vrot.slane %v267, %v311
  %v313 = vsel %vm293, %v312, %v308
  %v314 = vsel %vm113, %v313, %v294
  %vm315 = vcmask 261120
  %v316 = vsel %vm315, %v314, 0
  %318 = vmatprep.subr.mxu0 0.0
  %319 = vmatpush1.msra.mxu0 %v232
  %320 = vmatprep.subr.mxu0 0.0
  %321 = vmatpush1.msra.mxu0 %v233
  %322 = vmatprep.subr.mxu0 0.0
  %323 = vmatpush1.msra.mxu0 %v234
  %324 = vmatprep.subr.mxu0 0.0
  %325 = vmatpush1.msra.mxu0 %v235
  %326 = vmatprep.subr.mxu0 0.0
  %327 = vmatpush1.msra.mxu0 0.0
  %328 = vmatprep.subr.mxu0 0.0
  %329 = vmatpush1.msra.mxu0 0.0
  %330 = vmatprep.subr.mxu0 0.0
  %331 = vmatpush1.msra.mxu0 0.0
  %332 = vmatprep.subr.mxu0 0.0
  %333 = vmatpush1.msra.mxu0 0.0
  %334 = vmatprep.subr.mxu0 0.0
  %335 = vmatpush1.msra.mxu0 0.0
  %336 = vmatprep.subr.mxu0 0.0
  %337 = vmatpush1.msra.mxu0 0.0
  %338 = vmatprep.subr.mxu0 0.0
  %339 = vmatpush1.msra.mxu0 0.0
  %340 = vmatprep.subr.mxu0 0.0
  %341 = vmatpush1.msra.mxu0 0.0
  %342 = vmatprep.subr.mxu0 0.0
  %343 = vmatpush1.msra.mxu0 0.0
  %344 = vmatprep.subr.mxu0 0.0
  %345 = vmatpush1.msra.mxu0 0.0
  %346 = vmatprep.subr.mxu0 0.0
  %347 = vmatpush1.msra.mxu0 0.0
  %348 = vmatprep.subr.mxu0 0.0
  %349 = vmatpush1.msra.mxu0 0.0
  %350 = vmatprep.subr.mxu0 0.0
  %351 = vmatpush1.msra.mxu0 0.0
  %352 = vmatprep.subr.mxu0 0.0
  %353 = vmatpush1.msra.mxu0 0.0
  %354 = vmatprep.subr.mxu0 0.0
  %355 = vmatpush1.msra.mxu0 0.0
  %356 = vmatprep.subr.mxu0 0.0
  %357 = vmatpush1.msra.mxu0 0.0
  %358 = vmatprep.subr.mxu0 0.0
  %359 = vmatpush1.msra.mxu0 0.0
  %360 = vmatprep.subr.mxu0 0.0
  %361 = vmatpush1.msra.mxu0 0.0
  %362 = vmatprep.subr.mxu0 0.0
  %363 = vmatpush1.msra.mxu0 0.0
  %364 = vmatprep.subr.mxu0 0.0
  %365 = vmatpush1.msra.mxu0 0.0
  %366 = vmatprep.subr.mxu0 0.0
  %367 = vmatpush1.msra.mxu0 0.0
  %368 = vmatprep.subr.mxu0 0.0
  %369 = vmatpush1.msra.mxu0 0.0
  %370 = vmatprep.subr.mxu0 0.0
  %371 = vmatpush1.msra.mxu0 0.0
  %372 = vmatprep.subr.mxu0 0.0
  %373 = vmatpush1.msra.mxu0 0.0
  %374 = vmatprep.subr.mxu0 0.0
  %375 = vmatpush1.msra.mxu0 0.0
  %376 = vmatprep.subr.mxu0 0.0
  %377 = vmatpush1.msra.mxu0 0.0
  %378 = vmatprep.subr.mxu0 0.0
  %379 = vmatpush1.msra.mxu0 0.0
  %380 = vmatprep.subr.mxu0 0.0
  %381 = vmatpush1.msra.mxu0 0.0
  %382 = vmatprep.mubr.f32.mxu0 0.0
  %383 = vmatmul.mubr.f32.gmra.mrb[0].mxu0 %v316
  %v384 = vpop.f32.mrb[0].mxu0
  %v385 = vadd.f32 0.0, %v384
  %v386 = vpop.f32.mrb[0].mxu0
  %387 = vdwg.mxu0
  %vm388 = vcmp.ge.f32.partialorder %v385, 0.0
  %v389 = vmul.f32 %v385, 0.2
  %v390 = vsel %vm388, %v385, %v389
  %v391 = vld [vmem:[%s3] sm:$0xff]
  %v392 = vld [vmem:[%s3 + $0x8] sm:$0xff]
  %v393 = vld [vmem:[%s3 + $0x10] sm:$0xff]
  %v394 = vld [vmem:[%s3 + $0x18] sm:$0xff]
  %v396 = vsel %vm315, %v390, 0
  %398 = vmatprep.subr.mxu0 0.0
  %399 = vmatpush1.msra.mxu0 %v391
  %400 = vmatprep.subr.mxu0 0.0
  %401 = vmatpush1.msra.mxu0 %v392
  %402 = vmatprep.subr.mxu0 0.0
  %403 = vmatpush1.msra.mxu0 %v393
  %404 = vmatprep.subr.mxu0 0.0
  %405 = vmatpush1.msra.mxu0 %v394
  %406 = vmatprep.subr.mxu0 0.0
  %407 = vmatpush1.msra.mxu0 0.0
  %408 = vmatprep.subr.mxu0 0.0
  %409 = vmatpush1.msra.mxu0 0.0
  %410 = vmatprep.subr.mxu0 0.0
  %411 = vmatpush1.msra.mxu0 0.0
  %412 = vmatprep.subr.mxu0 0.0
  %413 = vmatpush1.msra.mxu0 0.0
  %414 = vmatprep.subr.mxu0 0.0
  %415 = vmatpush1.msra.mxu0 0.0
  %416 = vmatprep.subr.mxu0 0.0
  %417 = vmatpush1.msra.mxu0 0.0
  %418 = vmatprep.subr.mxu0 0.0
  %419 = vmatpush1.msra.mxu0 0.0
  %420 = vmatprep.subr.mxu0 0.0
  %421 = vmatpush1.msra.mxu0 0.0
  %422 = vmatprep.subr.mxu0 0.0
  %423 = vmatpush1.msra.mxu0 0.0
  %424 = vmatprep.subr.mxu0 0.0
  %425 = vmatpush1.msra.mxu0 0.0
  %426 = vmatprep.subr.mxu0 0.0
  %427 = vmatpush1.msra.mxu0 0.0
  %428 = vmatprep.subr.mxu0 0.0
  %429 = vmatpush1.msra.mxu0 0.0
  %430 = vmatprep.subr.mxu0 0.0
  %431 = vmatpush1.msra.mxu0 0.0
  %432 = vmatprep.subr.mxu0 0.0
  %433 = vmatpush1.msra.mxu0 0.0
  %434 = vmatprep.subr.mxu0 0.0
  %435 = vmatpush1.msra.mxu0 0.0
  %436 = vmatprep.subr.mxu0 0.0
  %437 = vmatpush1.msra.mxu0 0.0
  %438 = vmatprep.subr.mxu0 0.0
  %439 = vmatpush1.msra.mxu0 0.0
  %440 = vmatprep.subr.mxu0 0.0
  %441 = vmatpush1.msra.mxu0 0.0
  %442 = vmatprep.subr.mxu0 0.0
  %443 = vmatpush1.msra.mxu0 0.0
  %444 = vmatprep.subr.mxu0 0.0
  %445 = vmatpush1.msra.mxu0 0.0
  %446 = vmatprep.subr.mxu0 0.0
  %447 = vmatpush1.msra.mxu0 0.0
  %448 = vmatprep.subr.mxu0 0.0
  %449 = vmatpush1.msra.mxu0 0.0
  %450 = vmatprep.subr.mxu0 0.0
  %451 = vmatpush1.msra.mxu0 0.0
  %452 = vmatprep.subr.mxu0 0.0
  %453 = vmatpush1.msra.mxu0 0.0
  %454 = vmatprep.subr.mxu0 0.0
  %455 = vmatpush1.msra.mxu0 0.0
  %456 = vmatprep.subr.mxu0 0.0
  %457 = vmatpush1.msra.mxu0 0.0
  %458 = vmatprep.subr.mxu0 0.0
  %459 = vmatpush1.msra.mxu0 0.0
  %460 = vmatprep.subr.mxu0 0.0
  %461 = vmatpush1.msra.mxu0 0.0
  %462 = vmatprep.mubr.f32.mxu0 0.0
  %463 = vmatmul.mubr.f32.gmra.mrb[0].mxu0 %v396
  %v464 = vpop.f32.mrb[0].mxu0
  %v465 = vadd.f32 0.0, %v464
  %v466 = vpop.f32.mrb[0].mxu0
  %467 = vdwg.mxu0
  %v468 = vlaneseq
  %v469 = vshrl.u32 %v468, 7
  %v470 = vsub.s32 0, %v469
  %v471 = vrot.slane %v465, %v470
  %473 = vbcast.lane.b32.xlu0 %v471, 256
  %v474 = vpop.permute.xlu0 %473
  %s476 = sor.u32 256, 8
  %477 = vbcast.lane.b32.xlu0 %v471, %s476
  %v478 = vpop.permute.xlu0 %477
  %s480 = sor.u32 256, 16
  %481 = vbcast.lane.b32.xlu0 %v471, %s480
  %v482 = vpop.permute.xlu0 %481
  %s484 = sor.u32 256, 24
  %485 = vbcast.lane.b32.xlu0 %v471, %s484
  %v486 = vpop.permute.xlu0 %485
  %v487 = vlaneseq
  %v488 = vshrl.u32 %v487, 7
  %v489 = vsub.s32 1, %v488
  %v490 = vrot.slane %v465, %v489
  %492 = vbcast.lane.b32.xlu0 %v490, 256
  %v493 = vpop.permute.xlu0 %492
  %s495 = sor.u32 256, 8
  %496 = vbcast.lane.b32.xlu0 %v490, %s495
  %v497 = vpop.permute.xlu0 %496
  %s499 = sor.u32 256, 16
  %500 = vbcast.lane.b32.xlu0 %v490, %s499
  %v501 = vpop.permute.xlu0 %500
  %s503 = sor.u32 256, 24
  %504 = vbcast.lane.b32.xlu0 %v490, %s503
  %v505 = vpop.permute.xlu0 %504
  %v506 = vadd.f32 %v17, %v474
  %v507 = vadd.f32 %v18, %v474
  %v508 = vadd.f32 %v19, %v478
  %v509 = vadd.f32 %v20, %v478
  %v510 = vadd.f32 %v21, %v482
  %v511 = vadd.f32 %v22, %v482
  %v512 = vadd.f32 %v23, %v486
  %v513 = vadd.f32 %v24, %v486
  %v514 = vadd.f32 %v25, %v493
  %v515 = vadd.f32 %v26, %v493
  %v516 = vadd.f32 %v27, %v497
  %v517 = vadd.f32 %v28, %v497
  %v518 = vadd.f32 %v29, %v501
  %v519 = vadd.f32 %v30, %v501
  %v520 = vadd.f32 %v31, %v505
  %v521 = vadd.f32 %v32, %v505
  %522 = vst [vmem:[%s4] sm:$0xff] %v506
  %523 = vst [vmem:[%s4 + $0x8] sm:$0xff] %v507
  %524 = vst [vmem:[%s4 + $0x10] sm:$0xff] %v508
  %525 = vst [vmem:[%s4 + $0x18] sm:$0xff] %v509
  %526 = vst [vmem:[%s4 + $0x20] sm:$0xff] %v510
  %527 = vst [vmem:[%s4 + $0x28] sm:$0xff] %v511
  %528 = vst [vmem:[%s4 + $0x30] sm:$0xff] %v512
  %529 = vst [vmem:[%s4 + $0x38] sm:$0xff] %v513
  %530 = vst [vmem:[%s4 + $0x40] sm:$0xff] %v514
  %531 = vst [vmem:[%s4 + $0x48] sm:$0xff] %v515
  %532 = vst [vmem:[%s4 + $0x50] sm:$0xff] %v516
  %533 = vst [vmem:[%s4 + $0x58] sm:$0xff] %v517
  %534 = vst [vmem:[%s4 + $0x60] sm:$0xff] %v518
  %535 = vst [vmem:[%s4 + $0x68] sm:$0xff] %v519
  %536 = vst [vmem:[%s4 + $0x70] sm:$0xff] %v520
  %537 = vst [vmem:[%s4 + $0x78] sm:$0xff] %v521
  // Predicated region
  $region18: #{_dpm_forward_impl.1} parent=0 // pred_check
    _
  $region19: #{_dpm_forward_impl.1} parent=0 // pred_check_branch
    %539 = sbr.rel (0) target = $region21
  $region20: #{_dpm_forward_impl.1} parent=0 // pred_region
    _
  $region21: #{_dpm_forward_impl.1} parent=0 // pred_fallthru
    _
  // Predicated region
  $region22: #{_dpm_forward_impl.1} parent=0 // pred_check
    _
  $region23: #{_dpm_forward_impl.1} parent=0 // pred_check_branch
    %541 = sbr.rel (0) target = $region25
  $region24: #{_dpm_forward_impl.1} parent=0 // pred_region
    _
  $region25: #{_dpm_forward_impl.1} parent=0 // pred_fallthru
    _

</llo_original>
